<compile_context>
chip_gen: v5e
topology: v5e:2x2
jax: 0.10.0
libtpu: 0.0.40
codegen_flags: <defaults>
</compile_context>

<pallas_src>
import functools

import numpy as np
import jax
import jax.numpy as jnp
from jax.experimental import pallas as pl
from jax.experimental.pallas import tpu as pltpu


# ----------------------------------------------------------------------------
# Fused MLP kernel: x -> [x @ W_i + b_i -> ReLU]* -> x @ W_last + b_last
# ----------------------------------------------------------------------------
def _mlp_kernel(x_ref, *refs, num_layers: int):
    # refs = (w_0, b_0, w_1, b_1, ..., w_{L-1}, b_{L-1}, o_ref)
    # w_i: (Din_i, Dout_i) pre-transposed; b_i: (1, Dout_i); x_ref: (B, Din_0)
    o_ref = refs[-1]
    h = x_ref[...]
    for i in range(num_layers):            # unrolled: layer shapes differ
        w = refs[2 * i][...]
        b = refs[2 * i + 1][...]
        h = jnp.dot(h, w, preferred_element_type=jnp.float32) + b
        if i < num_layers - 1:
            h = jnp.maximum(h, 0.0)         # ReLU on all but the last layer
    o_ref[...] = h.astype(o_ref.dtype)


_TILE_B = 128  # batch tile for the large-batch gridded path (multiple of 8, >=128)


def _fused_mlp(params, x2d):
    """params: list of (w: (Din,Dout) f32, b: (1,Dout) f32); x2d: (B, Din) f32."""
    num_layers = len(params)
    B, Din = x2d.shape
    Dout = params[-1][0].shape[1]
    flat = []
    for w, b in params:
        flat.extend((w, b))
    kernel = functools.partial(_mlp_kernel, num_layers=num_layers)

    if B >= 2 * _TILE_B and B % _TILE_B == 0:
        # Tiled batch: weights/biases stay resident across grid steps; the
        # activation tiles are pipelined by BlockSpec; "parallel" lets the
        # grid shard across v7x's 2 TensorCores.
        wb_specs = []
        for w, b in params:
            wb_specs.append(pl.BlockSpec(w.shape, lambda i: (0, 0)))
            wb_specs.append(pl.BlockSpec(b.shape, lambda i: (0, 0)))
        return pl.pallas_call(
            kernel,
            out_shape=jax.ShapeDtypeStruct((B, Dout), jnp.float32),
            grid=(B // _TILE_B,),
            in_specs=[pl.BlockSpec((_TILE_B, Din), lambda i: (i, 0))] + wb_specs,
            out_specs=pl.BlockSpec((_TILE_B, Dout), lambda i: (i, 0)),
            compiler_params=pltpu.CompilerParams(
                dimension_semantics=("parallel",)),
        )(x2d, *flat)

    # Small batch: total operand set is a few KB — no grid, single invocation,
    # everything resident in VMEM.
    vmem = pl.BlockSpec(memory_space=pltpu.MemorySpace.VMEM)
    return pl.pallas_call(
        kernel,
        out_shape=jax.ShapeDtypeStruct((B, Dout), jnp.float32),
        in_specs=[vmem] * (1 + 2 * num_layers),
        out_specs=vmem,
    )(x2d, *flat)


# ----------------------------------------------------------------------------
# DenseNetwork params + forward (return_hidden=False path)
# ----------------------------------------------------------------------------
def dense_network_init(param_dict, key):
    """Deterministic init mirroring nn.Linear default
    (uniform(-1/sqrt(fan_in), 1/sqrt(fan_in)) for weight and bias).

    Weights are stored pre-transposed as (Din, Dout) and biases as (1, Dout)
    so the forward pass never pays a per-call transpose/reshape.
    """
    n_neurons = [param_dict["n_inputs"], *param_dict["params"], param_dict["n_outputs"]]
    params = []
    for i in range(len(n_neurons) - 1):
        fan_in, fan_out = n_neurons[i], n_neurons[i + 1]
        key, kw, kb = jax.random.split(key, 3)
        bound = 1.0 / float(np.sqrt(fan_in))
        w = jax.random.uniform(kw, (fan_out, fan_in), jnp.float32, -bound, bound)
        b = jax.random.uniform(kb, (fan_out,), jnp.float32, -bound, bound)
        params.append((w.T, b.reshape(1, fan_out)))   # one-time layout fix
    return params


def dense_network_forward(params, x):
    """Mirrors DenseNetwork.forward(x, return_hidden=False).

    Like torch's x.view((x_size[0], x_size[-1])), extra middle dims must be
    size 1 (otherwise .view would error); we assert that explicitly.
    """
    if x.ndim > 2:
        assert all(int(d) == 1 for d in x.shape[1:-1]), (
            "middle dims must be size 1 to match torch .view((B, n_inputs))")
    x2d = x.reshape((x.shape[0], x.shape[-1])).astype(jnp.float32)
    return _fused_mlp(params, x2d)
    # TODO(synk): return_hidden=True path (per-edge tensors x * W, defined only
    # for batch==1 in the reference) is not implemented.


# ----------------------------------------------------------------------------
# Plain-JAX reference (for correctness check)
# ----------------------------------------------------------------------------
def dense_network_forward_ref(params, x):
    x = x.reshape((x.shape[0], x.shape[-1])).astype(jnp.float32)
    for w, b in params[:-1]:
        x = jnp.maximum(x @ w + b, 0.0)
    w, b = params[-1]
    return x @ w + b


if __name__ == "__main__":
    key = jax.random.PRNGKey(0)
    param_dict = {"n_inputs": 8, "params": [32, 16], "n_outputs": 4}

    key, k_init, k_x1, k_x2 = jax.random.split(key, 4)
    params = dense_network_init(param_dict, k_init)

    # --- small batch, shaped like the torch module receives: (batch, 1, n_inputs)
    x_small = jax.random.normal(k_x1, (2, 1, param_dict["n_inputs"]), jnp.float32)
    out_small = jax.block_until_ready(dense_network_forward(params, x_small))
    ref_small = dense_network_forward_ref(params, x_small)
    assert out_small.shape == (2, param_dict["n_outputs"])
    assert jnp.allclose(out_small, ref_small, atol=1e-5, rtol=1e-5)

    # --- larger batch exercises the tiled, batch-parallel path
    x_large = jax.random.normal(k_x2, (256, param_dict["n_inputs"]), jnp.float32)
    out_large = jax.block_until_ready(dense_network_forward(params, x_large))
    ref_large = dense_network_forward_ref(params, x_large)
    assert out_large.shape == (256, param_dict["n_outputs"])
    assert jnp.allclose(out_large, ref_large, atol=1e-5, rtol=1e-5)

    print("KERNEL_OK")
</pallas_src>

<mosaic_0001>
module attributes {stable_mosaic.version = 11 : i64} {
  func.func @_mlp_kernel(%arg0: memref<2x8xf32, #tpu.memory_space<vmem>>, %arg1: memref<8x32xf32, #tpu.memory_space<vmem>>, %arg2: memref<1x32xf32, #tpu.memory_space<vmem>>, %arg3: memref<32x16xf32, #tpu.memory_space<vmem>>, %arg4: memref<1x16xf32, #tpu.memory_space<vmem>>, %arg5: memref<16x4xf32, #tpu.memory_space<vmem>>, %arg6: memref<1x4xf32, #tpu.memory_space<vmem>>, %arg7: memref<2x4xf32, #tpu.memory_space<vmem>>) attributes {dimension_semantics = [], scalar_prefetch = 0 : i64, scratch_operands = 0 : i64, tpu.core_type = #tpu.core_type<tc>} {
    %c0 = arith.constant 0 : index
    %c0_0 = arith.constant 0 : index
    %0 = vector.load %arg0[%c0, %c0_0] : memref<2x8xf32, #tpu.memory_space<vmem>>, vector<2x8xf32>
    %c0_1 = arith.constant 0 : index
    %c0_2 = arith.constant 0 : index
    %1 = vector.load %arg1[%c0_1, %c0_2] : memref<8x32xf32, #tpu.memory_space<vmem>>, vector<8x32xf32>
    %c0_3 = arith.constant 0 : index
    %c0_4 = arith.constant 0 : index
    %2 = vector.load %arg2[%c0_3, %c0_4] : memref<1x32xf32, #tpu.memory_space<vmem>>, vector<1x32xf32>
    %cst = arith.constant dense<0.000000e+00> : vector<2x32xf32>
    %3 = tpu.matmul %0, %1, %cst {dimension_numbers = #tpu.dot_dimension_numbers<[1], [0], [0], [1], [0, 0, 1, 1], [], []>} : vector<2x8xf32>, vector<8x32xf32>, vector<2x32xf32> -> vector<2x32xf32>
    %4 = vector.broadcast %2 : vector<1x32xf32> to vector<2x32xf32>
    %5 = arith.addf %3, %4 : vector<2x32xf32>
    %cst_5 = arith.constant 0.000000e+00 : f32
    %6 = vector.broadcast %cst_5 : f32 to vector<2x32xf32>
    %7 = arith.maximumf %5, %6 : vector<2x32xf32>
    %c0_6 = arith.constant 0 : index
    %c0_7 = arith.constant 0 : index
    %8 = vector.load %arg3[%c0_6, %c0_7] : memref<32x16xf32, #tpu.memory_space<vmem>>, vector<32x16xf32>
    %c0_8 = arith.constant 0 : index
    %c0_9 = arith.constant 0 : index
    %9 = vector.load %arg4[%c0_8, %c0_9] : memref<1x16xf32, #tpu.memory_space<vmem>>, vector<1x16xf32>
    %cst_10 = arith.constant dense<0.000000e+00> : vector<2x16xf32>
    %10 = tpu.matmul %7, %8, %cst_10 {dimension_numbers = #tpu.dot_dimension_numbers<[1], [0], [0], [1], [0, 0, 1, 1], [], []>} : vector<2x32xf32>, vector<32x16xf32>, vector<2x16xf32> -> vector<2x16xf32>
    %11 = vector.broadcast %9 : vector<1x16xf32> to vector<2x16xf32>
    %12 = arith.addf %10, %11 : vector<2x16xf32>
    %cst_11 = arith.constant 0.000000e+00 : f32
    %13 = vector.broadcast %cst_11 : f32 to vector<2x16xf32>
    %14 = arith.maximumf %12, %13 : vector<2x16xf32>
    %c0_12 = arith.constant 0 : index
    %c0_13 = arith.constant 0 : index
    %15 = vector.load %arg5[%c0_12, %c0_13] : memref<16x4xf32, #tpu.memory_space<vmem>>, vector<16x4xf32>
    %c0_14 = arith.constant 0 : index
    %c0_15 = arith.constant 0 : index
    %16 = vector.load %arg6[%c0_14, %c0_15] : memref<1x4xf32, #tpu.memory_space<vmem>>, vector<1x4xf32>
    %cst_16 = arith.constant dense<0.000000e+00> : vector<2x4xf32>
    %17 = tpu.matmul %14, %15, %cst_16 {dimension_numbers = #tpu.dot_dimension_numbers<[1], [0], [0], [1], [0, 0, 1, 1], [], []>} : vector<2x16xf32>, vector<16x4xf32>, vector<2x4xf32> -> vector<2x4xf32>
    %18 = vector.broadcast %16 : vector<1x4xf32> to vector<2x4xf32>
    %19 = arith.addf %17, %18 : vector<2x4xf32>
    %c0_17 = arith.constant 0 : index
    %c0_18 = arith.constant 0 : index
    %20 = vector.load %arg7[%c0_17, %c0_18] : memref<2x4xf32, #tpu.memory_space<vmem>>, vector<2x4xf32>
    tpu.vector_store %arg7[%c0_17, %c0_18], %19 {strides = array<i32>} : memref<2x4xf32, #tpu.memory_space<vmem>>, vector<2x4xf32>,
    return
  }
}

</mosaic_0001>

<llo_original>
// kernel: tpu_custom_call.1
$region0: #{tpu_custom_call.1}
  #allocation0 [shape = 'u32[]', space=smem, size = 0x4, offset = 0x4, fixed_abs, tag = 'smem constant byte address 0x4 - core index']
  #allocation1 [shape = 'u32[72,128]{1,0:T(1,128)}', space=vmem, size = 0x9000, scoped, tag = 'internal scratch']
  %s0 = inlined_call_operand.vmem [shape: f32[2,8], index: 0, kind: input, shape index: {}]
  %s1 = inlined_call_operand.vmem [shape: f32[8,32], index: 1, kind: input, shape index: {}]
  %s2 = inlined_call_operand.vmem [shape: f32[1,32], index: 2, kind: input, shape index: {}]
  %s3 = inlined_call_operand.vmem [shape: f32[32,16], index: 3, kind: input, shape index: {}]
  %s4 = inlined_call_operand.vmem [shape: f32[1,16], index: 4, kind: input, shape index: {}]
  %s5 = inlined_call_operand.vmem [shape: f32[16,4], index: 5, kind: input, shape index: {}]
  %s6 = inlined_call_operand.vmem [shape: f32[1,4], index: 6, kind: input, shape index: {}]
  %s7 = inlined_call_operand.hbm [shape: f32[2,4], index: 7, kind: output, shape index: {}]
  %s8 = sld [smem:[#allocation0]]
  $region38: #{tpu_custom_call.1} parent=0
    _
  %s10 = ssub.s32 1, %s8
  %s11 = scalar_select 0, %s10, %s8
  $region1: #{tpu_custom_call.1} parent=0
    #allocation2 [shape = 'u8[1024]{0}', space=vmem, size = 0x400, scoped, tag = 'output window, operand 0, single buffered']
    #allocation3 [shape = 's32[1]{0}', space=sflag, size = 0x4, scoped, tag = 'scoped memory for tpu_custom_call.1']
    %12 = vsyncpa [#allocation3], 0
    // Predicated region
    $region2: #{tpu_custom_call.1} parent=1 // pred_check
      _
    $region3: #{tpu_custom_call.1} parent=1 // pred_check_branch
      %14 = sbr.rel (0) target = $region5
    $region4: #{tpu_custom_call.1} parent=1 // pred_region
      _
    $region5: #{tpu_custom_call.1} parent=1 // pred_fallthru
      _
    // Predicated region
    $region6: #{tpu_custom_call.1} parent=1 // pred_check
      _
    $region7: #{tpu_custom_call.1} parent=1 // pred_check_branch
      %16 = sbr.rel (0) target = $region9
    $region8: #{tpu_custom_call.1} parent=1 // pred_region
      _
    $region9: #{tpu_custom_call.1} parent=1 // pred_fallthru
      _
    // Predicated region
    $region10: #{tpu_custom_call.1} parent=1 // pred_check
      _
    $region11: #{tpu_custom_call.1} parent=1 // pred_check_branch
      %18 = sbr.rel (0) target = $region13
    $region12: #{tpu_custom_call.1} parent=1 // pred_region
      _
    $region13: #{tpu_custom_call.1} parent=1 // pred_fallthru
      _
    // Predicated region
    $region14: #{tpu_custom_call.1} parent=1 // pred_check
      _
    $region15: #{tpu_custom_call.1} parent=1 // pred_check_branch
      %20 = sbr.rel (0) target = $region17
    $region16: #{tpu_custom_call.1} parent=1 // pred_region
      _
    $region17: #{tpu_custom_call.1} parent=1 // pred_fallthru
      _
    // Predicated region
    $region18: #{tpu_custom_call.1} parent=1 // pred_check
      _
    $region19: #{tpu_custom_call.1} parent=1 // pred_check_branch
      %22 = sbr.rel (0) target = $region21
    $region20: #{tpu_custom_call.1} parent=1 // pred_region
      _
    $region21: #{tpu_custom_call.1} parent=1 // pred_fallthru
      _
    // Predicated region
    $region22: #{tpu_custom_call.1} parent=1 // pred_check
      _
    $region23: #{tpu_custom_call.1} parent=1 // pred_check_branch
      %24 = sbr.rel (0) target = $region25
    $region24: #{tpu_custom_call.1} parent=1 // pred_region
      _
    $region25: #{tpu_custom_call.1} parent=1 // pred_fallthru
      _
    // Predicated region
    $region26: #{tpu_custom_call.1} parent=1 // pred_check
      _
    $region27: #{tpu_custom_call.1} parent=1 // pred_check_branch
      %26 = sbr.rel (0) target = $region29
    $region28: #{tpu_custom_call.1} parent=1 // pred_region
      _
    $region29: #{tpu_custom_call.1} parent=1 // pred_fallthru
      _
    %v27 = vld [vmem:[%s0] sm:$0x3]
    %v28 = vld [vmem:[%s1] sm:$0xff]
    %v29 = vld [vmem:[%s2] sm:$0x1]
    %v31 = vperm.slane %v29, 0
    %vm33 = vcmask 64512
    %v35 = vsel %vm33, %v27, 0
    %37 = vmatpush.msra.mxu0 0.0
    %38 = vmatpush.msra.mxu0 0.0
    %39 = vmatpush.msra.mxu0 0.0
    %40 = vmatpush.msra.mxu0 0.0
    %41 = vmatpush.msra.mxu0 0.0
    %42 = vmatpush.msra.mxu0 0.0
    %43 = vmatpush.msra.mxu0 0.0
    %44 = vmatpush.msra.mxu0 0.0
    %45 = vmatpush.msra.mxu0 0.0
    %46 = vmatpush.msra.mxu0 0.0
    %47 = vmatpush.msra.mxu0 0.0
    %48 = vmatpush.msra.mxu0 0.0
    %49 = vmatpush.msra.mxu0 0.0
    %50 = vmatpush.msra.mxu0 0.0
    %51 = vmatpush.msra.mxu0 0.0
    %52 = vmatpush.msra.mxu0 %v28
    %53 = vmatmul.f32.gmra.mxu0 %v35
    %v54 = vpop.f32.mrf.mxu0
    %v55 = vadd.f32 %v31, %v54
    %56 = vdwg.mxu0
    %v57 = vmax.f32 %v55, 0.0
    %v58 = vld [vmem:[%s3] sm:$0xff]
    %v59 = vld [vmem:[%s3 + $0x8] sm:$0xff]
    %v60 = vld [vmem:[%s3 + $0x10] sm:$0xff]
    %v61 = vld [vmem:[%s3 + $0x18] sm:$0xff]
    %v62 = vld [vmem:[%s4] sm:$0x1]
    %v64 = vperm.slane %v62, 0
    %vm66 = vcmask 261120
    %v68 = vsel %vm66, %v57, 0
    %70 = vmatpush.msra.mxu0 0.0
    %71 = vmatpush.msra.mxu0 0.0
    %72 = vmatpush.msra.mxu0 0.0
    %73 = vmatpush.msra.mxu0 0.0
    %74 = vmatpush.msra.mxu0 0.0
    %75 = vmatpush.msra.mxu0 0.0
    %76 = vmatpush.msra.mxu0 0.0
    %77 = vmatpush.msra.mxu0 0.0
    %78 = vmatpush.msra.mxu0 0.0
    %79 = vmatpush.msra.mxu0 0.0
    %80 = vmatpush.msra.mxu0 0.0
    %81 = vmatpush.msra.mxu0 0.0
    %82 = vmatpush.msra.mxu0 %v61
    %83 = vmatpush.msra.mxu0 %v60
    %84 = vmatpush.msra.mxu0 %v59
    %85 = vmatpush.msra.mxu0 %v58
    %86 = vmatmul.f32.gmra.mxu0 %v68
    %v87 = vpop.f32.mrf.mxu0
    %v88 = vadd.f32 %v64, %v87
    %89 = vdwg.mxu0
    %v90 = vmax.f32 %v88, 0.0
    %v91 = vld [vmem:[%s5] sm:$0xff]
    %v92 = vld [vmem:[%s5 + $0x8] sm:$0xff]
    %v93 = vld [vmem:[%s6] sm:$0x1]
    %v95 = vperm.slane %v93, 0
    %vm97 = vcmask 130048
    %v99 = vsel %vm97, %v90, 0
    %101 = vmatpush.msra.mxu0 0.0
    %102 = vmatpush.msra.mxu0 0.0
    %103 = vmatpush.msra.mxu0 0.0
    %104 = vmatpush.msra.mxu0 0.0
    %105 = vmatpush.msra.mxu0 0.0
    %106 = vmatpush.msra.mxu0 0.0
    %107 = vmatpush.msra.mxu0 0.0
    %108 = vmatpush.msra.mxu0 0.0
    %109 = vmatpush.msra.mxu0 0.0
    %110 = vmatpush.msra.mxu0 0.0
    %111 = vmatpush.msra.mxu0 0.0
    %112 = vmatpush.msra.mxu0 0.0
    %113 = vmatpush.msra.mxu0 0.0
    %114 = vmatpush.msra.mxu0 0.0
    %115 = vmatpush.msra.mxu0 %v92
    %116 = vmatpush.msra.mxu0 %v91
    %117 = vmatmul.f32.gmra.mxu0 %v99
    %v118 = vpop.f32.mrf.mxu0
    %v119 = vadd.f32 %v95, %v118
    %120 = vdwg.mxu0
    %vm121 = vcmask 25600
    %122 = vst.msk [vmem:[#allocation2] sm:$0x3] %vm121, %v119
    // Predicated region
    $region30: #{tpu_custom_call.1} parent=1 // pred_check
      _
    $region31: #{tpu_custom_call.1} parent=1 // pred_check_branch
      %124 = sbr.rel (0) target = $region33
    $region32: #{tpu_custom_call.1} parent=1 // pred_region
      %126 = vsyncadd [#allocation3], 0
      %s128 = sshll.u32 [#allocation2], 4
      %s129 = int_to_ptr.vmem [resolvable:$true] %s128
      %s130 = sshll.u32 %s7, 4
      %s131 = int_to_ptr.hbm [resolvable:$true] %s130
      %133 = dma.vmem_to_hbm [thread:$0]  %s129, 32, %s131, [#allocation3]
    $region33: #{tpu_custom_call.1} parent=1 // pred_fallthru
      _
    // Predicated region
    $region34: #{tpu_custom_call.1} parent=1 // pred_check
      _
    $region35: #{tpu_custom_call.1} parent=1 // pred_check_branch
      %135 = sbr.rel (0) target = $region37
    $region36: #{tpu_custom_call.1} parent=1 // pred_region
      %137 = dma.done [#allocation3], 32
    $region37: #{tpu_custom_call.1} parent=1 // pred_fallthru
      _
    %138 = vsyncpa [#allocation3], 1

</llo_original>
